<compile_context>
chip_gen: v5e
topology: v5e:2x2
jax: 0.10.0
libtpu: 0.0.40
codegen_flags: <defaults>
</compile_context>

<pallas_src>
import functools

import numpy as np
import jax
import jax.numpy as jnp
from jax.experimental import pallas as pl
from jax.experimental.pallas import tpu as pltpu

STD = 1.0   # `_std` default of AuxEncoder.forward / sample_gaussian
GL = 128    # lane width of the fused head slab and of the packed output group


def _round_up(x, m):
    return (x + m - 1) // m * m


def _layout(D, H, N):
    """Row/lane layout of the two packed weight slabs (all offsets 16-aligned)."""
    HL = _round_up(H, 128)          # lane-padded hidden width
    OFF_W2 = _round_up(D, 16)       # W2 rows start (16-row aligned for bf16 tiling)
    OFF_B1 = OFF_W2 + HL            # b1 row
    OFF_B2 = OFF_B1 + 16            # b2 row
    RA = OFF_B2 + 16                # slab A rows
    RB = HL + 16                    # slab B rows (head weights + bias row at HL)
    return HL, OFF_W2, OFF_B1, OFF_B2, RA, RB


# ----------------------------- kernel -----------------------------

def _aux_encoder_kernel(x_ref, eps_ref, wa_ref, wb_ref, out_ref, *,
                        D, N, HL, OFF_W2, OFF_B1, OFF_B2):
    """One batch tile (TB rows) of AuxEncoder.forward.

    wa_ref (bf16, lanes = HL):  rows [0:D)              -> W1' = 2*W1   (2x-1 folded in)
                                rows [OFF_W2:OFF_W2+HL) -> W2 (rows H..HL are ZERO:
                                     padded lanes of h1 equal softplus(0)=ln2 and must
                                     not leak -> this zero-fill is load-bearing)
                                row  OFF_B1             -> b1' = b1 - sum_rows(W1)
                                row  OFF_B2             -> b2
    wb_ref (bf16, lanes = GL):  rows [0:HL)  -> [Wmu | Wlv] fused head (rows H..HL zero)
                                row  HL      -> [bmu | blv]
    out_ref (f32) lanes: [0:HL)=h, [HL:HL+N)=mu, [HL+N:HL+2N)=logvar,
                         [HL+2N:HL+3N)=noise, rest zero.
    """
    f32 = jnp.float32
    bf16 = jnp.bfloat16

    w1 = wa_ref[0:D, :]                            # (D, HL)  bf16
    w2 = wa_ref[OFF_W2:OFF_W2 + HL, :]             # (HL, HL) bf16
    b1 = wa_ref[OFF_B1:OFF_B1 + 1, :]              # (1, HL)  bf16
    b2 = wa_ref[OFF_B2:OFF_B2 + 1, :]              # (1, HL)  bf16
    whead = wb_ref[0:HL, :]                        # (HL, GL) bf16
    bhead = wb_ref[HL:HL + 1, :]                   # (1, GL)  bf16

    # Layer 1: x is fed directly (2x-1 folded into W1'/b1'); bf16 MXU, f32 accumulate.
    z1 = jnp.dot(x_ref[...], w1, preferred_element_type=f32) + b1
    h1 = jax.nn.softplus(z1)                       # f32 EUP path (v5e has no bf16 EUP)

    # Layer 2.
    z2 = jnp.dot(h1.astype(bf16), w2, preferred_element_type=f32) + b2
    h = jax.nn.softplus(z2)                        # (TB, HL) f32

    # Fused NormalDistributionLinear: ONE (HL, 128) matmul -> [mu | logvar | 0...].
    head = jnp.dot(h.astype(bf16), whead, preferred_element_type=f32) + bhead
    mu = head[:, 0:N]
    logvar = head[:, N:2 * N]

    # Reparameterization: noise = mu + _std * exp(0.5*logvar) * eps.
    # (exp is unguarded, matching the PyTorch reference.)
    noise = mu + STD * jnp.exp(0.5 * logvar) * eps_ref[...]

    # Compact 256-lane output slab: two unmasked 128-lane stores + one 32-lane store.
    out_ref[:, 0:HL] = h
    out_ref[:, HL:HL + GL] = head                  # lanes [mu | logvar | zeros]
    out_ref[:, HL + 2 * N:HL + 3 * N] = noise      # fill the zero lanes with noise


# ----------------------------- wrapper -----------------------------

def aux_encoder_forward(x, eps, wa, wb, *, D, H, N, block_b=256):
    """Returns (noise, mu, logvar, h) like AuxEncoder.forward."""
    HL, OFF_W2, OFF_B1, OFF_B2, RA, RB = _layout(D, H, N)
    assert 3 * N <= GL, "packed output group requires 3*noise_dim <= 128"
    assert wa.shape == (RA, HL) and wb.shape == (RB, GL)

    B = x.shape[0]
    x_flat = x.reshape(B, D).astype(jnp.bfloat16)   # bf16 MXU operand, halves x DMA
    eps_f = eps.astype(jnp.float32)                 # (B, N), stays f32 (elementwise path)

    # Batch tile: fat tiles amortize the ~0.35us/step overhead, but keep >= 4
    # grid steps when B allows so each v7x TensorCore gets >= 2 steps of
    # DMA/compute overlap. Never shrink below 64 rows.
    TB = min(block_b, _round_up(B, 8))
    while TB > 64 and pl.cdiv(B, TB) < 4:
        TB //= 2
    Bp = _round_up(B, TB)
    if Bp != B:
        x_flat = jnp.pad(x_flat, ((0, Bp - B), (0, 0)))
        eps_f = jnp.pad(eps_f, ((0, Bp - B), (0, 0)))

    OUT_W = HL + GL
    cost = pl.CostEstimate(
        flops=2 * Bp * (D * HL + HL * HL + HL * GL),
        transcendentals=Bp * (4 * HL + N),          # 2 softplus layers (exp+log) + noise exp
        bytes_accessed=(Bp * D * 2 + Bp * N * 4 + RA * HL * 2 + RB * GL * 2
                        + Bp * OUT_W * 4),
    )

    kernel = functools.partial(_aux_encoder_kernel, D=D, N=N, HL=HL,
                               OFF_W2=OFF_W2, OFF_B1=OFF_B1, OFF_B2=OFF_B2)
    out = pl.pallas_call(
        kernel,
        out_shape=jax.ShapeDtypeStruct((Bp, OUT_W), jnp.float32),
        grid=(Bp // TB,),
        in_specs=[
            pl.BlockSpec((TB, D), lambda i: (i, 0)),       # x tile (bf16)
            pl.BlockSpec((TB, N), lambda i: (i, 0)),       # eps tile (f32, unpadded lanes)
            pl.BlockSpec((RA, HL), lambda i: (0, 0)),      # weight slab A (resident, bf16)
            pl.BlockSpec((RB, GL), lambda i: (0, 0)),      # head slab B  (resident, bf16)
        ],
        out_specs=pl.BlockSpec((TB, OUT_W), lambda i: (i, 0)),
        compiler_params=pltpu.CompilerParams(
            dimension_semantics=("parallel",)),
        cost_estimate=cost,
    )(x_flat, eps_f, wa, wb)

    out = out[:B]
    h = out[:, 0:H]
    mu = out[:, HL:HL + N]
    logvar = out[:, HL + N:HL + 2 * N]
    noise = out[:, HL + 2 * N:HL + 3 * N]
    return noise, mu, logvar, h


# -------------------- parameter construction (glue) --------------------

def init_params(key, D, H, N):
    kw = jax.random.split(key, 8)

    def xavier(k, fi, fo):
        lim = float(np.sqrt(6.0 / (fi + fo)))
        return jax.random.uniform(k, (fi, fo), jnp.float32, -lim, lim)

    return {
        'w1': xavier(kw[0], D, H), 'b1': 0.05 * jax.random.normal(kw[1], (H,), jnp.float32),
        'w2': xavier(kw[2], H, H), 'b2': 0.05 * jax.random.normal(kw[3], (H,), jnp.float32),
        'wmu': xavier(kw[4], H, N), 'bmu': 0.05 * jax.random.normal(kw[5], (N,), jnp.float32),
        'wlv': xavier(kw[6], H, N), 'blv': 0.05 * jax.random.normal(kw[7], (N,), jnp.float32),
    }


def pack_params(p, D, H, N):
    """Pack all params into two bf16 lane-padded slabs (see kernel docstring)."""
    HL, OFF_W2, OFF_B1, OFF_B2, RA, RB = _layout(D, H, N)
    assert 2 * N <= GL and 3 * N <= GL and H <= HL

    w1 = np.asarray(p['w1'], np.float32)
    b1 = np.asarray(p['b1'], np.float32)
    # Fold the input affine 2*x - 1 into layer 1:
    #   (2x - 1) @ W1 + b1  ==  x @ (2*W1) + (b1 - sum_rows(W1))
    w1f = 2.0 * w1
    b1f = b1 - w1.sum(axis=0)

    wa = np.zeros((RA, HL), np.float32)
    wa[0:D, 0:H] = w1f
    wa[OFF_W2:OFF_W2 + H, 0:H] = np.asarray(p['w2'])
    # Rows OFF_W2+H .. OFF_W2+HL and lanes H..HL stay ZERO by construction: padded
    # hidden lanes carry softplus(0)=ln2 and must not leak into the next layer.
    wa[OFF_B1, 0:H] = b1f
    wa[OFF_B2, 0:H] = np.asarray(p['b2'])

    wb = np.zeros((RB, GL), np.float32)
    wb[0:H, 0:N] = np.asarray(p['wmu'])
    wb[0:H, N:2 * N] = np.asarray(p['wlv'])
    wb[HL, 0:N] = np.asarray(p['bmu'])
    wb[HL, N:2 * N] = np.asarray(p['blv'])
    return (jnp.asarray(wa).astype(jnp.bfloat16),
            jnp.asarray(wb).astype(jnp.bfloat16))


# -------------------- pure-JAX reference (verification) --------------------

def ref_forward(x_flat, eps, p):
    x2 = 2.0 * x_flat - 1.0
    h1 = jax.nn.softplus(x2 @ p['w1'] + p['b1'])
    h = jax.nn.softplus(h1 @ p['w2'] + p['b2'])
    mu = h @ p['wmu'] + p['bmu']
    logvar = h @ p['wlv'] + p['blv']
    noise = mu + STD * jnp.exp(0.5 * logvar) * eps
    return noise, mu, logvar, h


if __name__ == "__main__":
    # NCHW input, small MNIST-like patches; h_dim/noise_dim kept lane-friendly.
    B, C, HH, WW = 256, 1, 16, 16
    D = C * HH * WW                      # input_dim = 256
    H_DIM, NOISE_DIM = 128, 32           # h_dim, noise_dim

    key = jax.random.PRNGKey(0)
    kx, kp, ke = jax.random.split(key, 3)
    x = jax.random.uniform(kx, (B, C, HH, WW), jnp.float32)      # pixels in [0, 1]
    params = init_params(kp, D, H_DIM, NOISE_DIM)
    eps = jax.random.normal(ke, (B, NOISE_DIM), jnp.float32)     # randn_like(std)

    wa, wb = pack_params(params, D, H_DIM, NOISE_DIM)
    outs = aux_encoder_forward(x, eps, wa, wb, D=D, H=H_DIM, N=NOISE_DIM)
    outs = jax.block_until_ready(outs)

    refs = ref_forward(x.reshape(B, D), eps, params)
    # bf16 MXU operands (f32 accumulate) vs a pure-f32 reference -> loosened tolerance.
    for name, o, r in zip(("noise", "mu", "logvar", "h"), outs, refs):
        np.testing.assert_allclose(np.asarray(o), np.asarray(r),
                                   rtol=5e-2, atol=1e-1, err_msg=name)
    print("KERNEL_OK")
</pallas_src>

<mosaic_0001>
module attributes {stable_mosaic.version = 11 : i64} {
  func.func @_aux_encoder_kernel(%arg0: i32, %arg1: memref<64x256xbf16, #tpu.memory_space<vmem>>, %arg2: memref<64x32xf32, #tpu.memory_space<vmem>>, %arg3: memref<416x128xbf16, #tpu.memory_space<vmem>>, %arg4: memref<144x128xbf16, #tpu.memory_space<vmem>>, %arg5: memref<64x256xf32, #tpu.memory_space<vmem>>) attributes {dimension_semantics = [#tpu.dimension_semantics<parallel>], iteration_bounds = array<i64: 4>, scalar_prefetch = 0 : i64, scratch_operands = 0 : i64, tpu.core_type = #tpu.core_type<tc>, window_params = [{transform_indices = @transform_0, window_bounds = array<i64: 64, 256>}, {transform_indices = @transform_1, window_bounds = array<i64: 64, 32>}, {pipeline_mode = #tpu.pipeline_mode<synchronous>, transform_indices = @transform_2, window_bounds = array<i64: 416, 128>}, {pipeline_mode = #tpu.pipeline_mode<synchronous>, transform_indices = @transform_3, window_bounds = array<i64: 144, 128>}, {transform_indices = @transform_4, window_bounds = array<i64: 64, 256>}]} {
    %c0 = arith.constant 0 : index
    %c0_0 = arith.constant 0 : index
    %0 = vector.load %arg3[%c0, %c0_0] : memref<416x128xbf16, #tpu.memory_space<vmem>>, vector<256x128xbf16>
    %c256 = arith.constant 256 : index
    %c0_1 = arith.constant 0 : index
    %1 = vector.load %arg3[%c256, %c0_1] : memref<416x128xbf16, #tpu.memory_space<vmem>>, vector<128x128xbf16>
    %c384 = arith.constant 384 : index
    %c0_2 = arith.constant 0 : index
    %2 = vector.load %arg3[%c384, %c0_2] : memref<416x128xbf16, #tpu.memory_space<vmem>>, vector<1x128xbf16>
    %c400 = arith.constant 400 : index
    %c0_3 = arith.constant 0 : index
    %3 = vector.load %arg3[%c400, %c0_3] : memref<416x128xbf16, #tpu.memory_space<vmem>>, vector<1x128xbf16>
    %c0_4 = arith.constant 0 : index
    %c0_5 = arith.constant 0 : index
    %4 = vector.load %arg4[%c0_4, %c0_5] : memref<144x128xbf16, #tpu.memory_space<vmem>>, vector<128x128xbf16>
    %c128 = arith.constant 128 : index
    %c0_6 = arith.constant 0 : index
    %5 = vector.load %arg4[%c128, %c0_6] : memref<144x128xbf16, #tpu.memory_space<vmem>>, vector<1x128xbf16>
    %c0_7 = arith.constant 0 : index
    %c0_8 = arith.constant 0 : index
    %6 = vector.load %arg1[%c0_7, %c0_8] : memref<64x256xbf16, #tpu.memory_space<vmem>>, vector<64x256xbf16>
    %cst = arith.constant dense<0.000000e+00> : vector<64x128xf32>
    %7 = tpu.matmul %6, %0, %cst {dimension_numbers = #tpu.dot_dimension_numbers<[1], [0], [0], [1], [0, 0, 1, 1], [], []>} : vector<64x256xbf16>, vector<256x128xbf16>, vector<64x128xf32> -> vector<64x128xf32>
    %8 = arith.extf %2 : vector<1x128xbf16> to vector<1x128xf32>
    %9 = vector.broadcast %8 : vector<1x128xf32> to vector<64x128xf32>
    %10 = arith.addf %7, %9 : vector<64x128xf32>
    %cst_9 = arith.constant 0.000000e+00 : f32
    %11 = vector.broadcast %cst_9 : f32 to vector<64x128xf32>
    %12 = arith.maximumf %10, %11 : vector<64x128xf32>
    %13 = vector.broadcast %cst_9 : f32 to vector<64x128xf32>
    %14 = arith.subf %10, %13 : vector<64x128xf32>
    %15 = arith.cmpf one, %14, %14 : vector<64x128xf32>
    %16 = vector.broadcast %cst_9 : f32 to vector<64x128xf32>
    %17 = arith.addf %10, %16 : vector<64x128xf32>
    %18 = math.absf %14 : vector<64x128xf32>
    %cst_10 = arith.constant 0.000000e+00 : f32
    %19 = vector.broadcast %cst_10 : f32 to vector<64x128xf32>
    %20 = arith.subf %19, %18 : vector<64x128xf32>
    %21 = math.exp %20 : vector<64x128xf32>
    %22 = math.log1p %21 : vector<64x128xf32>
    %23 = arith.addf %12, %22 : vector<64x128xf32>
    %24 = arith.select %15, %17, %23 : vector<64x128xi1>, vector<64x128xf32>
    %25 = arith.truncf %24 : vector<64x128xf32> to vector<64x128xbf16>
    %cst_11 = arith.constant dense<0.000000e+00> : vector<64x128xf32>
    %26 = tpu.matmul %25, %1, %cst_11 {dimension_numbers = #tpu.dot_dimension_numbers<[1], [0], [0], [1], [0, 0, 1, 1], [], []>} : vector<64x128xbf16>, vector<128x128xbf16>, vector<64x128xf32> -> vector<64x128xf32>
    %27 = arith.extf %3 : vector<1x128xbf16> to vector<1x128xf32>
    %28 = vector.broadcast %27 : vector<1x128xf32> to vector<64x128xf32>
    %29 = arith.addf %26, %28 : vector<64x128xf32>
    %cst_12 = arith.constant 0.000000e+00 : f32
    %30 = vector.broadcast %cst_12 : f32 to vector<64x128xf32>
    %31 = arith.maximumf %29, %30 : vector<64x128xf32>
    %32 = vector.broadcast %cst_12 : f32 to vector<64x128xf32>
    %33 = arith.subf %29, %32 : vector<64x128xf32>
    %34 = arith.cmpf one, %33, %33 : vector<64x128xf32>
    %35 = vector.broadcast %cst_12 : f32 to vector<64x128xf32>
    %36 = arith.addf %29, %35 : vector<64x128xf32>
    %37 = math.absf %33 : vector<64x128xf32>
    %cst_13 = arith.constant 0.000000e+00 : f32
    %38 = vector.broadcast %cst_13 : f32 to vector<64x128xf32>
    %39 = arith.subf %38, %37 : vector<64x128xf32>
    %40 = math.exp %39 : vector<64x128xf32>
    %41 = math.log1p %40 : vector<64x128xf32>
    %42 = arith.addf %31, %41 : vector<64x128xf32>
    %43 = arith.select %34, %36, %42 : vector<64x128xi1>, vector<64x128xf32>
    %44 = arith.truncf %43 : vector<64x128xf32> to vector<64x128xbf16>
    %cst_14 = arith.constant dense<0.000000e+00> : vector<64x128xf32>
    %45 = tpu.matmul %44, %4, %cst_14 {dimension_numbers = #tpu.dot_dimension_numbers<[1], [0], [0], [1], [0, 0, 1, 1], [], []>} : vector<64x128xbf16>, vector<128x128xbf16>, vector<64x128xf32> -> vector<64x128xf32>
    %46 = arith.extf %5 : vector<1x128xbf16> to vector<1x128xf32>
    %47 = vector.broadcast %46 : vector<1x128xf32> to vector<64x128xf32>
    %48 = arith.addf %45, %47 : vector<64x128xf32>
    %49 = vector.extract_strided_slice %48 {offsets = [0, 0], sizes = [64, 32], strides = [1, 1]} : vector<64x128xf32> to vector<64x32xf32>
    %50 = vector.extract_strided_slice %48 {offsets = [0, 32], sizes = [64, 32], strides = [1, 1]} : vector<64x128xf32> to vector<64x32xf32>
    %cst_15 = arith.constant 5.000000e-01 : f32
    %51 = vector.broadcast %cst_15 : f32 to vector<64x32xf32>
    %52 = arith.mulf %51, %50 : vector<64x32xf32>
    %53 = math.exp %52 : vector<64x32xf32>
    %cst_16 = arith.constant 1.000000e+00 : f32
    %54 = vector.broadcast %cst_16 : f32 to vector<64x32xf32>
    %55 = arith.mulf %54, %53 : vector<64x32xf32>
    %c0_17 = arith.constant 0 : index
    %c0_18 = arith.constant 0 : index
    %56 = vector.load %arg2[%c0_17, %c0_18] : memref<64x32xf32, #tpu.memory_space<vmem>>, vector<64x32xf32>
    %57 = arith.mulf %55, %56 : vector<64x32xf32>
    %58 = arith.addf %49, %57 : vector<64x32xf32>
    %c0_19 = arith.constant 0 : index
    %c0_20 = arith.constant 0 : index
    %59 = vector.load %arg5[%c0_19, %c0_20] : memref<64x256xf32, #tpu.memory_space<vmem>>, vector<64x128xf32>
    tpu.vector_store %arg5[%c0_19, %c0_20], %43 {strides = array<i32>} : memref<64x256xf32, #tpu.memory_space<vmem>>, vector<64x128xf32>,
    %c0_21 = arith.constant 0 : index
    %c128_22 = arith.constant 128 : index
    %60 = vector.load %arg5[%c0_21, %c128_22] : memref<64x256xf32, #tpu.memory_space<vmem>>, vector<64x128xf32>
    tpu.vector_store %arg5[%c0_21, %c128_22], %48 {strides = array<i32>} : memref<64x256xf32, #tpu.memory_space<vmem>>, vector<64x128xf32>,
    %c0_23 = arith.constant 0 : index
    %c192 = arith.constant 192 : index
    %61 = vector.load %arg5[%c0_23, %c192] : memref<64x256xf32, #tpu.memory_space<vmem>>, vector<64x32xf32>
    tpu.vector_store %arg5[%c0_23, %c192], %58 {strides = array<i32>} : memref<64x256xf32, #tpu.memory_space<vmem>>, vector<64x32xf32>,
    return
  }
  func.func @transform_0(%arg0: i32) -> (i32, i32) {
    %c0_i32 = arith.constant 0 : i32
    %c0_i32_0 = arith.constant 0 : i32
    return %arg0, %c0_i32 : i32, i32
  }
  func.func @transform_1(%arg0: i32) -> (i32, i32) {
    %c0_i32 = arith.constant 0 : i32
    %c0_i32_0 = arith.constant 0 : i32
    return %arg0, %c0_i32 : i32, i32
  }
  func.func @transform_2(%arg0: i32) -> (i32, i32) {
    %c0_i32 = arith.constant 0 : i32
    %c0_i32_0 = arith.constant 0 : i32
    %c0_i32_1 = arith.constant 0 : i32
    return %c0_i32, %c0_i32_0 : i32, i32
  }
  func.func @transform_3(%arg0: i32) -> (i32, i32) {
    %c0_i32 = arith.constant 0 : i32
    %c0_i32_0 = arith.constant 0 : i32
    %c0_i32_1 = arith.constant 0 : i32
    return %c0_i32, %c0_i32_0 : i32, i32
  }
  func.func @transform_4(%arg0: i32) -> (i32, i32) {
    %c0_i32 = arith.constant 0 : i32
    %c0_i32_0 = arith.constant 0 : i32
    return %arg0, %c0_i32 : i32, i32
  }
}

</mosaic_0001>

<llo_original>
// kernel: tpu_custom_call.1
$region0: #{tpu_custom_call.1}
  #allocation0 [shape = 'u32[]', space=smem, size = 0x4, offset = 0x4, fixed_abs, tag = 'smem constant byte address 0x4 - core index']
  #allocation1 [shape = 'u32[72,128]{1,0:T(1,128)}', space=vmem, size = 0x9000, scoped, tag = 'internal scratch']
  %s0 = inlined_call_operand.vmem [shape: bf16[256,256], index: 0, kind: input, shape index: {}]
  %s1 = inlined_call_operand.vmem [shape: f32[256,32], index: 1, kind: input, shape index: {}]
  %s2 = inlined_call_operand.hbm [shape: bf16[416,128], index: 2, kind: input, shape index: {}]
  %s3 = inlined_call_operand.hbm [shape: bf16[144,128], index: 3, kind: input, shape index: {}]
  %s4 = inlined_call_operand.hbm [shape: f32[256,256], index: 4, kind: output, shape index: {}]
  %s5 = sld [smem:[#allocation0]]
  $region57: #{tpu_custom_call.1} parent=0
    _
  %s7 = ssub.s32 1, %s5
  %s8 = scalar_select 0, %s7, %s5
  $region1: #{tpu_custom_call.1} parent=0
    #allocation2 [shape = 'u8[106496]{0}', space=vmem, size = 0x1a000, scoped, tag = 'input window, operand 2, single buffered']
    #allocation3 [shape = 's32[2]{0}', space=sflag, size = 0x8, scoped, tag = 'scoped memory for tpu_custom_call.1']
    #allocation4 [shape = 's32[2]{0}', space=sflag, size = 0x8, scoped, tag = 'scoped memory for tpu_custom_call.1']
    #allocation5 [shape = 'u8[36864]{0}', space=vmem, size = 0x9000, scoped, tag = 'input window, operand 3, single buffered']
    #allocation6 [shape = 's32[1]{0}', space=sflag, size = 0x4, scoped, tag = 'scoped memory for tpu_custom_call.1']
    #allocation7 [shape = 'u8[131072]{0}', space=vmem, size = 0x20000, scoped, tag = 'output window, operand 0']
    %9 = vsyncpa [#allocation3], 0
    %10 = vsyncpa [#allocation6], 0
    %11 = vsyncpa [#allocation4], 0
    %s12 = scalar_lea.sflag [#allocation4], 1
    %13 = vsyncpa %s12, 0
    loop: start=0, step=1, limit=6
    $region2: #{tpu_custom_call.1} parent=1 // loop_pre_header
      _
    $region3: #{tpu_custom_call.1} parent=1 // loop_header
      %s15 = sphi 0, %s19
      %p16 = scmp.ge.s32.totalorder %s15, 6
      %s25 = sphi 0, %s27
      %s28 = sphi 0, %s25
      %s29 = sphi 0, %s28
      %s45 = sphi 0, %s29
      %s51 = sphi 0, %s53
      %s54 = sphi 0, %s51
      %s55 = sphi 0, %s54
      %s71 = sphi 0, %s55
      %s75 = sphi 0, %s75
      %s77 = sphi 0, %s75
      %s78 = sphi 0, %s77
      %s92 = sphi 0, %s78
      %s96 = sphi 0, %s96
      %s98 = sphi 0, %s96
      %s99 = sphi 0, %s98
      %s113 = sphi 0, %s99
      %s119 = sphi 0, %s121
      %s122 = sphi 0, %s119
      %s123 = sphi 0, %s122
      %s139 = sphi 0, %s123
    $region4: #{tpu_custom_call.1} parent=1 // loop_header_branch
      %18 = sbr.rel (%p16) target = $region8
    $region5: #{tpu_custom_call.1} parent=1 // loop_body
      %s20 = ssub.s32 %s15, 1
      %s21 = ssub.s32 %s15, 2
      %s22 = sadd.s32 %s15, 1
      %s23 = ssub.s32 %s15, %s22
      %p24 = scmp.eq.s32.totalorder %s23, 0
      %s26 = sadd.s32 %s25, 1
      %s27 = scalar_select %p24, %s25, %s26
      %p30 = pneg %p24
      %p31 = scmp.eq.s32.totalorder %s15, 3
      %p32 = por %p30, %p31
      %p33 = scmp.ne.s32.totalorder %s25, %s28
      %p34 = scmp.eq.s32.totalorder %s15, 0
      %p35 = por %p33, %p34
      %p36 = scmp.ne.s32.totalorder %s25, %s28
      %p37 = scmp.eq.s32.totalorder %s20, 3
      %p38 = por %p36, %p37
      %p39 = scmp.ne.s32.totalorder %s28, %s29
      %p40 = scmp.eq.s32.totalorder %s20, 0
      %p41 = por %p39, %p40
      %p42 = scmp.ne.s32.totalorder %s28, %s29
      %p43 = scmp.eq.s32.totalorder %s21, 3
      %p44 = por %p42, %p43
      %p46 = scmp.ne.s32.totalorder %s29, %s45
      %p47 = scmp.eq.s32.totalorder %s21, 0
      %p48 = por %p46, %p47
      %s49 = ssub.s32 %s15, %s22
      %p50 = scmp.eq.s32.totalorder %s49, 0
      %s52 = sadd.s32 %s51, 1
      %s53 = scalar_select %p50, %s51, %s52
      %p56 = pneg %p50
      %p57 = scmp.eq.s32.totalorder %s15, 3
      %p58 = por %p56, %p57
      %p59 = scmp.ne.s32.totalorder %s51, %s54
      %p60 = scmp.eq.s32.totalorder %s15, 0
      %p61 = por %p59, %p60
      %p62 = scmp.ne.s32.totalorder %s51, %s54
      %p63 = scmp.eq.s32.totalorder %s20, 3
      %p64 = por %p62, %p63
      %p65 = scmp.ne.s32.totalorder %s54, %s55
      %p66 = scmp.eq.s32.totalorder %s20, 0
      %p67 = por %p65, %p66
      %p68 = scmp.ne.s32.totalorder %s54, %s55
      %p69 = scmp.eq.s32.totalorder %s21, 3
      %p70 = por %p68, %p69
      %p72 = scmp.ne.s32.totalorder %s55, %s71
      %p73 = scmp.eq.s32.totalorder %s21, 0
      %p74 = por %p72, %p73
      %s76 = sadd.s32 %s75, 1
      %p79 = scmp.eq.s32.totalorder %s15, 3
      %p80 = scmp.ne.s32.totalorder %s75, %s77
      %p81 = scmp.eq.s32.totalorder %s15, 0
      %p82 = por %p80, %p81
      %p83 = scmp.ne.s32.totalorder %s75, %s77
      %p84 = scmp.eq.s32.totalorder %s20, 3
      %p85 = por %p83, %p84
      %p86 = scmp.ne.s32.totalorder %s77, %s78
      %p87 = scmp.eq.s32.totalorder %s20, 0
      %p88 = por %p86, %p87
      %p89 = scmp.ne.s32.totalorder %s77, %s78
      %p90 = scmp.eq.s32.totalorder %s21, 3
      %p91 = por %p89, %p90
      %p93 = scmp.ne.s32.totalorder %s78, %s92
      %p94 = scmp.eq.s32.totalorder %s21, 0
      %p95 = por %p93, %p94
      %s97 = sadd.s32 %s96, 1
      %p100 = scmp.eq.s32.totalorder %s15, 3
      %p101 = scmp.ne.s32.totalorder %s96, %s98
      %p102 = scmp.eq.s32.totalorder %s15, 0
      %p103 = por %p101, %p102
      %p104 = scmp.ne.s32.totalorder %s96, %s98
      %p105 = scmp.eq.s32.totalorder %s20, 3
      %p106 = por %p104, %p105
      %p107 = scmp.ne.s32.totalorder %s98, %s99
      %p108 = scmp.eq.s32.totalorder %s20, 0
      %p109 = por %p107, %p108
      %p110 = scmp.ne.s32.totalorder %s98, %s99
      %p111 = scmp.eq.s32.totalorder %s21, 3
      %p112 = por %p110, %p111
      %p114 = scmp.ne.s32.totalorder %s99, %s113
      %p115 = scmp.eq.s32.totalorder %s21, 0
      %p116 = por %p114, %p115
      %s117 = ssub.s32 %s15, %s22
      %p118 = scmp.eq.s32.totalorder %s117, 0
      %s120 = sadd.s32 %s119, 1
      %s121 = scalar_select %p118, %s119, %s120
      %p124 = pneg %p118
      %p125 = scmp.eq.s32.totalorder %s15, 3
      %p126 = por %p124, %p125
      %p127 = scmp.ne.s32.totalorder %s119, %s122
      %p128 = scmp.eq.s32.totalorder %s15, 0
      %p129 = por %p127, %p128
      %p130 = scmp.ne.s32.totalorder %s119, %s122
      %p131 = scmp.eq.s32.totalorder %s20, 3
      %p132 = por %p130, %p131
      %p133 = scmp.ne.s32.totalorder %s122, %s123
      %p134 = scmp.eq.s32.totalorder %s20, 0
      %p135 = por %p133, %p134
      %p136 = scmp.ne.s32.totalorder %s122, %s123
      %p137 = scmp.eq.s32.totalorder %s21, 3
      %p138 = por %p136, %p137
      %p140 = scmp.ne.s32.totalorder %s123, %s139
      %p141 = scmp.eq.s32.totalorder %s21, 0
      %p142 = por %p140, %p141
      %p143 = scmp.le.s32.totalorder 1, %s15
      %p144 = scmp.lt.s32.totalorder %s15, 5
      %p145 = pnand %p143, %p144
      %p146 = pneg %p145
      // Predicated region
      $region9: #{tpu_custom_call.1} parent=5 // pred_check
        _
      $region10: #{tpu_custom_call.1} parent=5 // pred_check_branch
        %148 = sbr.rel (%p145) target = $region12
      $region11: #{tpu_custom_call.1} parent=5 // pred_region
        %s149 = ssub.s32 %s15, 1
        // Predicated region
        $region13: #{tpu_custom_call.1} parent=11 // pred_check
          %p150 = pneg %p88
        $region14: #{tpu_custom_call.1} parent=11 // pred_check_branch
          %152 = sbr.rel (%p150) target = $region16
        $region15: #{tpu_custom_call.1} parent=11 // pred_region
          %154 = vsyncadd [#allocation3], 0
          %s155 = sshll.u32 %s2, 4
          %s156 = int_to_ptr.hbm [resolvable:$true] %s155
          %s157 = sshll.u32 [#allocation2], 4
          %s158 = int_to_ptr.vmem [resolvable:$true] %s157
          %163 = dma.hbm_to_vmem [thread:$0]  %s156, 3328, %s158, [#allocation3], 64, 64, 4
        $region16: #{tpu_custom_call.1} parent=11 // pred_fallthru
          _
        // Predicated region
        $region17: #{tpu_custom_call.1} parent=11 // pred_check
          %p164 = pneg %p109
        $region18: #{tpu_custom_call.1} parent=11 // pred_check_branch
          %166 = sbr.rel (%p164) target = $region20
        $region19: #{tpu_custom_call.1} parent=11 // pred_region
          %168 = vsyncadd [#allocation6], 0
          %s169 = sshll.u32 %s3, 4
          %s170 = int_to_ptr.hbm [resolvable:$true] %s169
          %s171 = sshll.u32 [#allocation5], 4
          %s172 = int_to_ptr.vmem [resolvable:$true] %s171
          %177 = dma.hbm_to_vmem [thread:$0]  %s170, 1152, %s172, [#allocation6], 64, 64, 4
        $region20: #{tpu_custom_call.1} parent=11 // pred_fallthru
          _
      $region12: #{tpu_custom_call.1} parent=5 // pred_fallthru
        _
      %p178 = scmp.lt.s32.totalorder %s15, 4
      // Predicated region
      $region21: #{tpu_custom_call.1} parent=5 // pred_check
        %p179 = pneg %p178
      $region22: #{tpu_custom_call.1} parent=5 // pred_check_branch
        %181 = sbr.rel (%p179) target = $region24
      $region23: #{tpu_custom_call.1} parent=5 // pred_region
        // Predicated region
        $region25: #{tpu_custom_call.1} parent=23 // pred_check
          %p182 = pneg %p35
        $region26: #{tpu_custom_call.1} parent=23 // pred_check_branch
          %184 = sbr.rel (%p182) target = $region28
        $region27: #{tpu_custom_call.1} parent=23 // pred_region
          %s185 = smul.u32 8, %s15
          %p186 = scmp.lt.s32.totalorder %s185, 31
          %s187 = scalar_select %p186, %s185, 31
          %s188 = smul.addr %s187, 2
          %s189 = smul.addr %s188, 4
          %s190 = scalar_lea.vmem %s0, %s189
          %s191 = smul.u32 8, %s15
        $region28: #{tpu_custom_call.1} parent=23 // pred_fallthru
          _
        // Predicated region
        $region29: #{tpu_custom_call.1} parent=23 // pred_check
          %p192 = pneg %p61
        $region30: #{tpu_custom_call.1} parent=23 // pred_check_branch
          %194 = sbr.rel (%p192) target = $region32
        $region31: #{tpu_custom_call.1} parent=23 // pred_region
          %s195 = smul.u32 8, %s15
          %p196 = scmp.lt.s32.totalorder %s195, 31
          %s197 = scalar_select %p196, %s195, 31
          %s198 = smul.addr %s197, 8
          %s199 = scalar_lea.vmem %s1, %s198
          %s200 = smul.u32 8, %s15
        $region32: #{tpu_custom_call.1} parent=23 // pred_fallthru
          _
      $region24: #{tpu_custom_call.1} parent=5 // pred_fallthru
        _
      %p201 = scmp.le.s32.totalorder 1, %s15
      %p202 = scmp.lt.s32.totalorder %s15, 5
      %p203 = pnand %p201, %p202
      %p204 = pneg %p203
      // Predicated region
      $region33: #{tpu_custom_call.1} parent=5 // pred_check
        _
      $region34: #{tpu_custom_call.1} parent=5 // pred_check_branch
        %206 = sbr.rel (%p203) target = $region36
      $region35: #{tpu_custom_call.1} parent=5 // pred_region
        %s207 = ssub.s32 %s15, 1
        // Predicated region
        $region37: #{tpu_custom_call.1} parent=35 // pred_check
          %p208 = pneg %p88
        $region38: #{tpu_custom_call.1} parent=35 // pred_check_branch
          %210 = sbr.rel (%p208) target = $region40
        $region39: #{tpu_custom_call.1} parent=35 // pred_region
          %212 = dma.done [#allocation3], 3328
        $region40: #{tpu_custom_call.1} parent=35 // pred_fallthru
          _
        // Predicated region
        $region41: #{tpu_custom_call.1} parent=35 // pred_check
          %p213 = pneg %p109
        $region42: #{tpu_custom_call.1} parent=35 // pred_check_branch
          %215 = sbr.rel (%p213) target = $region44
        $region43: #{tpu_custom_call.1} parent=35 // pred_region
          %217 = dma.done [#allocation6], 1152
        $region44: #{tpu_custom_call.1} parent=35 // pred_fallthru
          _
        %s218 = smul.u32 8, %s20
        %p219 = scmp.lt.s32.totalorder %s218, 31
        %s220 = scalar_select %p219, %s218, 31
        %s221 = smul.addr %s220, 2
        %s222 = smul.addr %s221, 4
        %s223 = scalar_lea.vmem %s0, %s222
        %p224 = pneg %p41
        %p225 = pneg %p38
        %s226 = smul.u32 8, %s20
        %p227 = scmp.lt.s32.totalorder %s226, 31
        %s228 = scalar_select %p227, %s226, 31
        %s229 = smul.addr %s228, 8
        %s230 = scalar_lea.vmem %s1, %s229
        %p231 = pneg %p67
        %p232 = pneg %p64
        %p233 = pneg %p88
        %p234 = pneg %p85
        %p235 = pneg %p109
        %p236 = pneg %p106
        %p237 = pneg %p135
        %p238 = pneg %p132
        %s239 = sand.u32 %s122, 1
        %s240 = scalar_lea.sflag [#allocation4], %s239
        %s241 = sand.u32 %s122, 1
        %s242 = smul.addr %s241, 128
        %s243 = scalar_lea.vmem [#allocation7], %s242
        %s244 = smul.u32 8, %s20
        %p245 = scmp.lt.s32.totalorder %s244, 31
        %s246 = scalar_select %p245, %s244, 31
        %s247 = smul.addr %s246, 2
        %s248 = smul.addr %s247, 4
        %s249 = scalar_lea.vmem %s0, %s248
        %s250 = smul.u32 8, %s20
        %s251 = smul.u32 8, %s20
        %p252 = scmp.lt.s32.totalorder %s251, 31
        %s253 = scalar_select %p252, %s251, 31
        %s254 = smul.addr %s253, 8
        %s255 = scalar_lea.vmem %s1, %s254
        %s256 = smul.u32 8, %s20
        %s257 = smul.u32 8, %s20
        %v258 = vld [vmem:[#allocation2] sm:$0xf]
        %v259 = vld [vmem:[#allocation2 + $0x4] sm:$0xf]
        %v260 = vld [vmem:[#allocation2 + $0x8] sm:$0xf]
        %v261 = vld [vmem:[#allocation2 + $0xc] sm:$0xf]
        %v262 = vld [vmem:[#allocation2 + $0x10] sm:$0xf]
        %v263 = vld [vmem:[#allocation2 + $0x14] sm:$0xf]
        %v264 = vld [vmem:[#allocation2 + $0x18] sm:$0xf]
        %v265 = vld [vmem:[#allocation2 + $0x1c] sm:$0xf]
        %v266 = vld [vmem:[#allocation2 + $0x20] sm:$0xf]
        %v267 = vld [vmem:[#allocation2 + $0x24] sm:$0xf]
        %v268 = vld [vmem:[#allocation2 + $0x28] sm:$0xf]
        %v269 = vld [vmem:[#allocation2 + $0x2c] sm:$0xf]
        %v270 = vld [vmem:[#allocation2 + $0x30] sm:$0xf]
        %v271 = vld [vmem:[#allocation2 + $0x34] sm:$0xf]
        %v272 = vld [vmem:[#allocation2 + $0x38] sm:$0xf]
        %v273 = vld [vmem:[#allocation2 + $0x3c] sm:$0xf]
        %v274 = vld [vmem:[#allocation2 + $0x40] sm:$0xf]
        %v275 = vld [vmem:[#allocation2 + $0x44] sm:$0xf]
        %v276 = vld [vmem:[#allocation2 + $0x48] sm:$0xf]
        %v277 = vld [vmem:[#allocation2 + $0x4c] sm:$0xf]
        %v278 = vld [vmem:[#allocation2 + $0x50] sm:$0xf]
        %v279 = vld [vmem:[#allocation2 + $0x54] sm:$0xf]
        %v280 = vld [vmem:[#allocation2 + $0x58] sm:$0xf]
        %v281 = vld [vmem:[#allocation2 + $0x5c] sm:$0xf]
        %v282 = vld [vmem:[#allocation2 + $0x60] sm:$0xf]
        %v283 = vld [vmem:[#allocation2 + $0x64] sm:$0xf]
        %v284 = vld [vmem:[#allocation2 + $0x68] sm:$0xf]
        %v285 = vld [vmem:[#allocation2 + $0x6c] sm:$0xf]
        %v286 = vld [vmem:[#allocation2 + $0x70] sm:$0xf]
        %v287 = vld [vmem:[#allocation2 + $0x74] sm:$0xf]
        %v288 = vld [vmem:[#allocation2 + $0x78] sm:$0xf]
        %v289 = vld [vmem:[#allocation2 + $0x7c] sm:$0xf]
        %v290 = vld [vmem:[#allocation2 + $0x80] sm:$0xf]
        %v291 = vld [vmem:[#allocation2 + $0x84] sm:$0xf]
        %v292 = vld [vmem:[#allocation2 + $0x88] sm:$0xf]
        %v293 = vld [vmem:[#allocation2 + $0x8c] sm:$0xf]
        %v294 = vld [vmem:[#allocation2 + $0x90] sm:$0xf]
        %v295 = vld [vmem:[#allocation2 + $0x94] sm:$0xf]
        %v296 = vld [vmem:[#allocation2 + $0x98] sm:$0xf]
        %v297 = vld [vmem:[#allocation2 + $0x9c] sm:$0xf]
        %v298 = vld [vmem:[#allocation2 + $0xa0] sm:$0xf]
        %v299 = vld [vmem:[#allocation2 + $0xa4] sm:$0xf]
        %v300 = vld [vmem:[#allocation2 + $0xa8] sm:$0xf]
        %v301 = vld [vmem:[#allocation2 + $0xac] sm:$0xf]
        %v302 = vld [vmem:[#allocation2 + $0xb0] sm:$0xf]
        %v303 = vld [vmem:[#allocation2 + $0xb4] sm:$0xf]
        %v304 = vld [vmem:[#allocation2 + $0xb8] sm:$0xf]
        %v305 = vld [vmem:[#allocation2 + $0xbc] sm:$0xf]
        %v306 = vld [vmem:[#allocation2 + $0xc0] sm:$0x1]
        %v307 = vld [vmem:[#allocation2 + $0xc8] sm:$0x1]
        %v308 = vld [vmem:[#allocation5] sm:$0xf]
        %v309 = vld [vmem:[#allocation5 + $0x4] sm:$0xf]
        %v310 = vld [vmem:[#allocation5 + $0x8] sm:$0xf]
        %v311 = vld [vmem:[#allocation5 + $0xc] sm:$0xf]
        %v312 = vld [vmem:[#allocation5 + $0x10] sm:$0xf]
        %v313 = vld [vmem:[#allocation5 + $0x14] sm:$0xf]
        %v314 = vld [vmem:[#allocation5 + $0x18] sm:$0xf]
        %v315 = vld [vmem:[#allocation5 + $0x1c] sm:$0xf]
        %v316 = vld [vmem:[#allocation5 + $0x20] sm:$0xf]
        %v317 = vld [vmem:[#allocation5 + $0x24] sm:$0xf]
        %v318 = vld [vmem:[#allocation5 + $0x28] sm:$0xf]
        %v319 = vld [vmem:[#allocation5 + $0x2c] sm:$0xf]
        %v320 = vld [vmem:[#allocation5 + $0x30] sm:$0xf]
        %v321 = vld [vmem:[#allocation5 + $0x34] sm:$0xf]
        %v322 = vld [vmem:[#allocation5 + $0x38] sm:$0xf]
        %v323 = vld [vmem:[#allocation5 + $0x3c] sm:$0xf]
        %v324 = vld [vmem:[#allocation5 + $0x40] sm:$0x1]
        %v325 = vld [vmem:[%s249] sm:$0xff]
        %v326 = vld [vmem:[%s249 + $0x8] sm:$0xff]
        %v327 = vld [vmem:[%s249 + $0x10] sm:$0xff]
        %v328 = vld [vmem:[%s249 + $0x18] sm:$0xff]
        %v329 = vld [vmem:[%s249 + $0x20] sm:$0xff]
        %v330 = vld [vmem:[%s249 + $0x28] sm:$0xff]
        %v331 = vld [vmem:[%s249 + $0x30] sm:$0xff]
        %v332 = vld [vmem:[%s249 + $0x38] sm:$0xff]
        %v333 = vunpack.c.l.bf16 %v306
        %v334 = vperm.slane %v333, 0
        %v343 = vunpack.c.l.b16 %v325
        %v344 = vunpack.c.h.b16 %v325
        %v345 = vunpack.c.l.b16 %v326
        %v346 = vunpack.c.h.b16 %v326
        %v347 = vunpack.c.l.b16 %v327
        %v348 = vunpack.c.h.b16 %v327
        %v349 = vunpack.c.l.b16 %v328
        %v350 = vunpack.c.h.b16 %v328
        %v351 = vunpack.c.l.b16 %v329
        %v352 = vunpack.c.h.b16 %v329
        %v353 = vunpack.c.l.b16 %v330
        %v354 = vunpack.c.h.b16 %v330
        %v355 = vunpack.c.l.b16 %v331
        %v356 = vunpack.c.h.b16 %v331
        %v357 = vunpack.c.l.b16 %v332
        %v358 = vunpack.c.h.b16 %v332
        %v359 = vpack.c.b16 %v345, %v343
        %v360 = vpack.c.b16 %v346, %v344
        %v361 = vpack.c.b16 %v349, %v347
        %v362 = vpack.c.b16 %v350, %v348
        %v363 = vpack.c.b16 %v353, %v351
        %v364 = vpack.c.b16 %v354, %v352
        %v365 = vpack.c.b16 %v357, %v355
        %v366 = vpack.c.b16 %v358, %v356
        %v407 = vunpack.c.l.b16 %v258
        %v408 = vunpack.c.l.b16 %v259
        %v409 = vunpack.c.l.b16 %v260
        %v410 = vunpack.c.l.b16 %v261
        %v411 = vunpack.c.l.b16 %v262
        %v412 = vunpack.c.l.b16 %v263
        %v413 = vunpack.c.l.b16 %v264
        %v414 = vunpack.c.l.b16 %v265
        %v415 = vunpack.c.l.b16 %v266
        %v416 = vunpack.c.l.b16 %v267
        %v417 = vunpack.c.l.b16 %v268
        %v418 = vunpack.c.l.b16 %v269
        %v419 = vunpack.c.l.b16 %v270
        %v420 = vunpack.c.l.b16 %v271
        %v421 = vunpack.c.l.b16 %v272
        %v422 = vunpack.c.l.b16 %v273
        %v423 = vunpack.c.l.b16 %v274
        %v424 = vunpack.c.l.b16 %v275
        %v425 = vunpack.c.l.b16 %v276
        %v426 = vunpack.c.l.b16 %v277
        %v427 = vunpack.c.l.b16 %v278
        %v428 = vunpack.c.l.b16 %v279
        %v429 = vunpack.c.l.b16 %v280
        %v430 = vunpack.c.l.b16 %v281
        %v431 = vunpack.c.l.b16 %v282
        %v432 = vunpack.c.l.b16 %v283
        %v433 = vunpack.c.l.b16 %v284
        %v434 = vunpack.c.l.b16 %v285
        %v435 = vunpack.c.l.b16 %v286
        %v436 = vunpack.c.l.b16 %v287
        %v437 = vunpack.c.l.b16 %v288
        %v438 = vunpack.c.l.b16 %v289
        %v439 = vpack.c.b16 %v408, %v407
        %v440 = vpack.c.b16 %v410, %v409
        %v441 = vpack.c.b16 %v412, %v411
        %v442 = vpack.c.b16 %v414, %v413
        %v443 = vpack.c.b16 %v416, %v415
        %v444 = vpack.c.b16 %v418, %v417
        %v445 = vpack.c.b16 %v420, %v419
        %v446 = vpack.c.b16 %v422, %v421
        %v447 = vpack.c.b16 %v424, %v423
        %v448 = vpack.c.b16 %v426, %v425
        %v449 = vpack.c.b16 %v428, %v427
        %v450 = vpack.c.b16 %v430, %v429
        %v451 = vpack.c.b16 %v432, %v431
        %v452 = vpack.c.b16 %v434, %v433
        %v453 = vpack.c.b16 %v436, %v435
        %v454 = vpack.c.b16 %v438, %v437
        %471 = vmatpush.bf16.msra.mxu0 %v446
        %472 = vmatpush.bf16.msra.mxu0 %v445
        %473 = vmatpush.bf16.msra.mxu0 %v444
        %474 = vmatpush.bf16.msra.mxu0 %v443
        %475 = vmatpush.bf16.msra.mxu0 %v442
        %476 = vmatpush.bf16.msra.mxu0 %v441
        %477 = vmatpush.bf16.msra.mxu0 %v440
        %478 = vmatpush.bf16.msra.mxu0 %v439
        %479 = vmatmul.bf16.gmra.mxu0 %v359
        %v480 = vpop.f32.mrf.mxu0
        %v481 = vadd.f32 %v334, %v480
        %v482 = vpop.f32.mrf.mxu0
        %v483 = vadd.f32 %v334, %v482
        %484 = vmatmul.bf16.gmra.mxu0 %v361
        %v485 = vpop.f32.mrf.mxu0
        %v486 = vadd.f32 %v334, %v485
        %v487 = vpop.f32.mrf.mxu0
        %v488 = vadd.f32 %v334, %v487
        %489 = vmatmul.bf16.gmra.mxu0 %v363
        %v490 = vpop.f32.mrf.mxu0
        %v491 = vadd.f32 %v334, %v490
        %v492 = vpop.f32.mrf.mxu0
        %v493 = vadd.f32 %v334, %v492
        %494 = vmatmul.bf16.gmra.mxu0 %v365
        %v495 = vpop.f32.mrf.mxu0
        %v496 = vadd.f32 %v334, %v495
        %v497 = vpop.f32.mrf.mxu0
        %v498 = vadd.f32 %v334, %v497
        %499 = vdwg.mxu0
        %500 = vmatpush.bf16.msra.mxu0 %v454
        %501 = vmatpush.bf16.msra.mxu0 %v453
        %502 = vmatpush.bf16.msra.mxu0 %v452
        %503 = vmatpush.bf16.msra.mxu0 %v451
        %504 = vmatpush.bf16.msra.mxu0 %v450
        %505 = vmatpush.bf16.msra.mxu0 %v449
        %506 = vmatpush.bf16.msra.mxu0 %v448
        %507 = vmatpush.bf16.msra.mxu0 %v447
        %508 = vmatmul.bf16.gmra.mxu0 %v360
        %v509 = vpop.f32.mrf.mxu0
        %v510 = vadd.f32 %v481, %v509
        %v511 = vpop.f32.mrf.mxu0
        %v512 = vadd.f32 %v483, %v511
        %513 = vmatmul.bf16.gmra.mxu0 %v362
        %v514 = vpop.f32.mrf.mxu0
        %v515 = vadd.f32 %v486, %v514
        %v516 = vpop.f32.mrf.mxu0
        %v517 = vadd.f32 %v488, %v516
        %518 = vmatmul.bf16.gmra.mxu0 %v364
        %v519 = vpop.f32.mrf.mxu0
        %v520 = vadd.f32 %v491, %v519
        %v521 = vpop.f32.mrf.mxu0
        %v522 = vadd.f32 %v493, %v521
        %523 = vmatmul.bf16.gmra.mxu0 %v366
        %v524 = vpop.f32.mrf.mxu0
        %v525 = vadd.f32 %v496, %v524
        %v526 = vpop.f32.mrf.mxu0
        %v527 = vadd.f32 %v498, %v526
        %528 = vdwg.mxu0
        %v529 = vmax.f32 %v510, 0.0
        %v530 = vmax.f32 %v512, 0.0
        %v531 = vmax.f32 %v515, 0.0
        %v532 = vmax.f32 %v517, 0.0
        %v533 = vmax.f32 %v520, 0.0
        %v534 = vmax.f32 %v522, 0.0
        %v535 = vmax.f32 %v525, 0.0
        %v536 = vmax.f32 %v527, 0.0
        %vm537 = vcmp.ne.f32.partialorder %v510, %v510
        %vm538 = vcmp.ne.f32.partialorder %v512, %v512
        %vm539 = vcmp.ne.f32.partialorder %v515, %v515
        %vm540 = vcmp.ne.f32.partialorder %v517, %v517
        %vm541 = vcmp.ne.f32.partialorder %v520, %v520
        %vm542 = vcmp.ne.f32.partialorder %v522, %v522
        %vm543 = vcmp.ne.f32.partialorder %v525, %v525
        %vm544 = vcmp.ne.f32.partialorder %v527, %v527
        %v545 = vadd.f32 %v510, 0.0
        %v546 = vadd.f32 %v512, 0.0
        %v547 = vadd.f32 %v515, 0.0
        %v548 = vadd.f32 %v517, 0.0
        %v549 = vadd.f32 %v520, 0.0
        %v550 = vadd.f32 %v522, 0.0
        %v551 = vadd.f32 %v525, 0.0
        %v552 = vadd.f32 %v527, 0.0
        %v553 = vand.u32 2147483647, %v510
        %v554 = vand.u32 2147483647, %v512
        %v555 = vand.u32 2147483647, %v515
        %v556 = vand.u32 2147483647, %v517
        %v557 = vand.u32 2147483647, %v520
        %v558 = vand.u32 2147483647, %v522
        %v559 = vand.u32 2147483647, %v525
        %v560 = vand.u32 2147483647, %v527
        %v561 = vsub.f32 0.0, %v553
        %v562 = vsub.f32 0.0, %v554
        %v563 = vsub.f32 0.0, %v555
        %v564 = vsub.f32 0.0, %v556
        %v565 = vsub.f32 0.0, %v557
        %v566 = vsub.f32 0.0, %v558
        %v567 = vsub.f32 0.0, %v559
        %v568 = vsub.f32 0.0, %v560
        %v569 = vmul.f32 %v561, 1.442695
        %v570 = vpow.pop %v569
        %v571 = vmul.f32 %v562, 1.442695
        %v572 = vpow.pop %v571
        %v573 = vmul.f32 %v563, 1.442695
        %v574 = vpow.pop %v573
        %v575 = vmul.f32 %v564, 1.442695
        %v576 = vpow.pop %v575
        %v577 = vmul.f32 %v565, 1.442695
        %v578 = vpow.pop %v577
        %v579 = vmul.f32 %v566, 1.442695
        %v580 = vpow.pop %v579
        %v581 = vmul.f32 %v567, 1.442695
        %v582 = vpow.pop %v581
        %v583 = vmul.f32 %v568, 1.442695
        %v584 = vpow.pop %v583
        %v585 = vadd.f32 %v570, 1.0
        %v586 = vlog2.pop %v585
        %v587 = vmul.f32 %v586, 0.6931472
        %v588 = vmul.f32 -0.5, %v570
        %v589 = vadd.f32 %v588, 1.0
        %v590 = vmul.f32 %v589, %v570
        %v591 = vand.u32 2147483647, %v570
        %vm592 = vcmp.lt.f32.partialorder %v591, 0.0004427343
        %v593 = vsel %vm592, %v590, %v587
        %v594 = vadd.f32 %v572, 1.0
        %v595 = vlog2.pop %v594
        %v596 = vmul.f32 %v595, 0.6931472
        %v597 = vmul.f32 -0.5, %v572
        %v598 = vadd.f32 %v597, 1.0
        %v599 = vmul.f32 %v598, %v572
        %v600 = vand.u32 2147483647, %v572
        %vm601 = vcmp.lt.f32.partialorder %v600, 0.0004427343
        %v602 = vsel %vm601, %v599, %v596
        %v603 = vadd.f32 %v574, 1.0
        %v604 = vlog2.pop %v603
        %v605 = vmul.f32 %v604, 0.6931472
        %v606 = vmul.f32 -0.5, %v574
        %v607 = vadd.f32 %v606, 1.0
        %v608 = vmul.f32 %v607, %v574
        %v609 = vand.u32 2147483647, %v574
        %vm610 = vcmp.lt.f32.partialorder %v609, 0.0004427343
        %v611 = vsel %vm610, %v608, %v605
        %v612 = vadd.f32 %v576, 1.0
        %v613 = vlog2.pop %v612
        %v614 = vmul.f32 %v613, 0.6931472
        %v615 = vmul.f32 -0.5, %v576
        %v616 = vadd.f32 %v615, 1.0
        %v617 = vmul.f32 %v616, %v576
        %v618 = vand.u32 2147483647, %v576
        %vm619 = vcmp.lt.f32.partialorder %v618, 0.0004427343
        %v620 = vsel %vm619, %v617, %v614
        %v621 = vadd.f32 %v578, 1.0
        %v622 = vlog2.pop %v621
        %v623 = vmul.f32 %v622, 0.6931472
        %v624 = vmul.f32 -0.5, %v578
        %v625 = vadd.f32 %v624, 1.0
        %v626 = vmul.f32 %v625, %v578
        %v627 = vand.u32 2147483647, %v578
        %vm628 = vcmp.lt.f32.partialorder %v627, 0.0004427343
        %v629 = vsel %vm628, %v626, %v623
        %v630 = vadd.f32 %v580, 1.0
        %v631 = vlog2.pop %v630
        %v632 = vmul.f32 %v631, 0.6931472
        %v633 = vmul.f32 -0.5, %v580
        %v634 = vadd.f32 %v633, 1.0
        %v635 = vmul.f32 %v634, %v580
        %v636 = vand.u32 2147483647, %v580
        %vm637 = vcmp.lt.f32.partialorder %v636, 0.0004427343
        %v638 = vsel %vm637, %v635, %v632
        %v639 = vadd.f32 %v582, 1.0
        %v640 = vlog2.pop %v639
        %v641 = vmul.f32 %v640, 0.6931472
        %v642 = vmul.f32 -0.5, %v582
        %v643 = vadd.f32 %v642, 1.0
        %v644 = vmul.f32 %v643, %v582
        %v645 = vand.u32 2147483647, %v582
        %vm646 = vcmp.lt.f32.partialorder %v645, 0.0004427343
        %v647 = vsel %vm646, %v644, %v641
        %v648 = vadd.f32 %v584, 1.0
        %v649 = vlog2.pop %v648
        %v650 = vmul.f32 %v649, 0.6931472
        %v651 = vmul.f32 -0.5, %v584
        %v652 = vadd.f32 %v651, 1.0
        %v653 = vmul.f32 %v652, %v584
        %v654 = vand.u32 2147483647, %v584
        %vm655 = vcmp.lt.f32.partialorder %v654, 0.0004427343
        %v656 = vsel %vm655, %v653, %v650
        %v657 = vadd.f32 %v529, %v593
        %v658 = vadd.f32 %v530, %v602
        %v659 = vadd.f32 %v531, %v611
        %v660 = vadd.f32 %v532, %v620
        %v661 = vadd.f32 %v533, %v629
        %v662 = vadd.f32 %v534, %v638
        %v663 = vadd.f32 %v535, %v647
        %v664 = vadd.f32 %v536, %v656
        %v665 = vsel %vm537, %v545, %v657
        %v666 = vsel %vm538, %v546, %v658
        %v667 = vsel %vm539, %v547, %v659
        %v668 = vsel %vm540, %v548, %v660
        %v669 = vsel %vm541, %v549, %v661
        %v670 = vsel %vm542, %v550, %v662
        %v671 = vsel %vm543, %v551, %v663
        %v672 = vsel %vm544, %v552, %v664
        %v673 = vpack.c.bf16 %v666, %v665
        %v674 = vpack.c.bf16 %v668, %v667
        %v675 = vpack.c.bf16 %v670, %v669
        %v676 = vpack.c.bf16 %v672, %v671
        %v677 = vunpack.c.l.bf16 %v307
        %v678 = vperm.slane %v677, 0
        %v695 = vunpack.c.l.b16 %v290
        %v696 = vunpack.c.l.b16 %v291
        %v697 = vunpack.c.l.b16 %v292
        %v698 = vunpack.c.l.b16 %v293
        %v699 = vunpack.c.l.b16 %v294
        %v700 = vunpack.c.l.b16 %v295
        %v701 = vunpack.c.l.b16 %v296
        %v702 = vunpack.c.l.b16 %v297
        %v703 = vunpack.c.l.b16 %v298
        %v704 = vunpack.c.l.b16 %v299
        %v705 = vunpack.c.l.b16 %v300
        %v706 = vunpack.c.l.b16 %v301
        %v707 = vunpack.c.l.b16 %v302
        %v708 = vunpack.c.l.b16 %v303
        %v709 = vunpack.c.l.b16 %v304
        %v710 = vunpack.c.l.b16 %v305
        %v711 = vpack.c.b16 %v696, %v695
        %v712 = vpack.c.b16 %v698, %v697
        %v713 = vpack.c.b16 %v700, %v699
        %v714 = vpack.c.b16 %v702, %v701
        %v715 = vpack.c.b16 %v704, %v703
        %v716 = vpack.c.b16 %v706, %v705
        %v717 = vpack.c.b16 %v708, %v707
        %v718 = vpack.c.b16 %v710, %v709
        %727 = vmatpush.bf16.msra.mxu0 %v718
        %728 = vmatpush.bf16.msra.mxu0 %v717
        %729 = vmatpush.bf16.msra.mxu0 %v716
        %730 = vmatpush.bf16.msra.mxu0 %v715
        %731 = vmatpush.bf16.msra.mxu0 %v714
        %732 = vmatpush.bf16.msra.mxu0 %v713
        %733 = vmatpush.bf16.msra.mxu0 %v712
        %734 = vmatpush.bf16.msra.mxu0 %v711
        %735 = vmatmul.bf16.gmra.mxu0 %v673
        %v736 = vpop.f32.mrf.mxu0
        %v737 = vadd.f32 %v678, %v736
        %v738 = vpop.f32.mrf.mxu0
        %v739 = vadd.f32 %v678, %v738
        %740 = vmatmul.bf16.gmra.mxu0 %v674
        %v741 = vpop.f32.mrf.mxu0
        %v742 = vadd.f32 %v678, %v741
        %v743 = vpop.f32.mrf.mxu0
        %v744 = vadd.f32 %v678, %v743
        %745 = vmatmul.bf16.gmra.mxu0 %v675
        %v746 = vpop.f32.mrf.mxu0
        %v747 = vadd.f32 %v678, %v746
        %v748 = vpop.f32.mrf.mxu0
        %v749 = vadd.f32 %v678, %v748
        %750 = vmatmul.bf16.gmra.mxu0 %v676
        %v751 = vpop.f32.mrf.mxu0
        %v752 = vadd.f32 %v678, %v751
        %v753 = vpop.f32.mrf.mxu0
        %v754 = vadd.f32 %v678, %v753
        %755 = vdwg.mxu0
        %v756 = vmax.f32 %v737, 0.0
        %v757 = vmax.f32 %v739, 0.0
        %v758 = vmax.f32 %v742, 0.0
        %v759 = vmax.f32 %v744, 0.0
        %v760 = vmax.f32 %v747, 0.0
        %v761 = vmax.f32 %v749, 0.0
        %v762 = vmax.f32 %v752, 0.0
        %v763 = vmax.f32 %v754, 0.0
        %vm764 = vcmp.ne.f32.partialorder %v737, %v737
        %vm765 = vcmp.ne.f32.partialorder %v739, %v739
        %vm766 = vcmp.ne.f32.partialorder %v742, %v742
        %vm767 = vcmp.ne.f32.partialorder %v744, %v744
        %vm768 = vcmp.ne.f32.partialorder %v747, %v747
        %vm769 = vcmp.ne.f32.partialorder %v749, %v749
        %vm770 = vcmp.ne.f32.partialorder %v752, %v752
        %vm771 = vcmp.ne.f32.partialorder %v754, %v754
        %v772 = vadd.f32 %v737, 0.0
        %v773 = vadd.f32 %v739, 0.0
        %v774 = vadd.f32 %v742, 0.0
        %v775 = vadd.f32 %v744, 0.0
        %v776 = vadd.f32 %v747, 0.0
        %v777 = vadd.f32 %v749, 0.0
        %v778 = vadd.f32 %v752, 0.0
        %v779 = vadd.f32 %v754, 0.0
        %v780 = vand.u32 2147483647, %v737
        %v781 = vand.u32 2147483647, %v739
        %v782 = vand.u32 2147483647, %v742
        %v783 = vand.u32 2147483647, %v744
        %v784 = vand.u32 2147483647, %v747
        %v785 = vand.u32 2147483647, %v749
        %v786 = vand.u32 2147483647, %v752
        %v787 = vand.u32 2147483647, %v754
        %v788 = vsub.f32 0.0, %v780
        %v789 = vsub.f32 0.0, %v781
        %v790 = vsub.f32 0.0, %v782
        %v791 = vsub.f32 0.0, %v783
        %v792 = vsub.f32 0.0, %v784
        %v793 = vsub.f32 0.0, %v785
        %v794 = vsub.f32 0.0, %v786
        %v795 = vsub.f32 0.0, %v787
        %v796 = vmul.f32 %v788, 1.442695
        %v797 = vpow.pop %v796
        %v798 = vmul.f32 %v789, 1.442695
        %v799 = vpow.pop %v798
        %v800 = vmul.f32 %v790, 1.442695
        %v801 = vpow.pop %v800
        %v802 = vmul.f32 %v791, 1.442695
        %v803 = vpow.pop %v802
        %v804 = vmul.f32 %v792, 1.442695
        %v805 = vpow.pop %v804
        %v806 = vmul.f32 %v793, 1.442695
        %v807 = vpow.pop %v806
        %v808 = vmul.f32 %v794, 1.442695
        %v809 = vpow.pop %v808
        %v810 = vmul.f32 %v795, 1.442695
        %v811 = vpow.pop %v810
        %v812 = vadd.f32 %v797, 1.0
        %v813 = vlog2.pop %v812
        %v814 = vmul.f32 %v813, 0.6931472
        %v815 = vmul.f32 -0.5, %v797
        %v816 = vadd.f32 %v815, 1.0
        %v817 = vmul.f32 %v816, %v797
        %v818 = vand.u32 2147483647, %v797
        %vm819 = vcmp.lt.f32.partialorder %v818, 0.0004427343
        %v820 = vsel %vm819, %v817, %v814
        %v821 = vadd.f32 %v799, 1.0
        %v822 = vlog2.pop %v821
        %v823 = vmul.f32 %v822, 0.6931472
        %v824 = vmul.f32 -0.5, %v799
        %v825 = vadd.f32 %v824, 1.0
        %v826 = vmul.f32 %v825, %v799
        %v827 = vand.u32 2147483647, %v799
        %vm828 = vcmp.lt.f32.partialorder %v827, 0.0004427343
        %v829 = vsel %vm828, %v826, %v823
        %v830 = vadd.f32 %v801, 1.0
        %v831 = vlog2.pop %v830
        %v832 = vmul.f32 %v831, 0.6931472
        %v833 = vmul.f32 -0.5, %v801
        %v834 = vadd.f32 %v833, 1.0
        %v835 = vmul.f32 %v834, %v801
        %v836 = vand.u32 2147483647, %v801
        %vm837 = vcmp.lt.f32.partialorder %v836, 0.0004427343
        %v838 = vsel %vm837, %v835, %v832
        %v839 = vadd.f32 %v803, 1.0
        %v840 = vlog2.pop %v839
        %v841 = vmul.f32 %v840, 0.6931472
        %v842 = vmul.f32 -0.5, %v803
        %v843 = vadd.f32 %v842, 1.0
        %v844 = vmul.f32 %v843, %v803
        %v845 = vand.u32 2147483647, %v803
        %vm846 = vcmp.lt.f32.partialorder %v845, 0.0004427343
        %v847 = vsel %vm846, %v844, %v841
        %v848 = vadd.f32 %v805, 1.0
        %v849 = vlog2.pop %v848
        %v850 = vmul.f32 %v849, 0.6931472
        %v851 = vmul.f32 -0.5, %v805
        %v852 = vadd.f32 %v851, 1.0
        %v853 = vmul.f32 %v852, %v805
        %v854 = vand.u32 2147483647, %v805
        %vm855 = vcmp.lt.f32.partialorder %v854, 0.0004427343
        %v856 = vsel %vm855, %v853, %v850
        %v857 = vadd.f32 %v807, 1.0
        %v858 = vlog2.pop %v857
        %v859 = vmul.f32 %v858, 0.6931472
        %v860 = vmul.f32 -0.5, %v807
        %v861 = vadd.f32 %v860, 1.0
        %v862 = vmul.f32 %v861, %v807
        %v863 = vand.u32 2147483647, %v807
        %vm864 = vcmp.lt.f32.partialorder %v863, 0.0004427343
        %v865 = vsel %vm864, %v862, %v859
        %v866 = vadd.f32 %v809, 1.0
        %v867 = vlog2.pop %v866
        %v868 = vmul.f32 %v867, 0.6931472
        %v869 = vmul.f32 -0.5, %v809
        %v870 = vadd.f32 %v869, 1.0
        %v871 = vmul.f32 %v870, %v809
        %v872 = vand.u32 2147483647, %v809
        %vm873 = vcmp.lt.f32.partialorder %v872, 0.0004427343
        %v874 = vsel %vm873, %v871, %v868
        %v875 = vadd.f32 %v811, 1.0
        %v876 = vlog2.pop %v875
        %v877 = vmul.f32 %v876, 0.6931472
        %v878 = vmul.f32 -0.5, %v811
        %v879 = vadd.f32 %v878, 1.0
        %v880 = vmul.f32 %v879, %v811
        %v881 = vand.u32 2147483647, %v811
        %vm882 = vcmp.lt.f32.partialorder %v881, 0.0004427343
        %v883 = vsel %vm882, %v880, %v877
        %v884 = vadd.f32 %v756, %v820
        %v885 = vadd.f32 %v757, %v829
        %v886 = vadd.f32 %v758, %v838
        %v887 = vadd.f32 %v759, %v847
        %v888 = vadd.f32 %v760, %v856
        %v889 = vadd.f32 %v761, %v865
        %v890 = vadd.f32 %v762, %v874
        %v891 = vadd.f32 %v763, %v883
        %v892 = vsel %vm764, %v772, %v884
        %v893 = vsel %vm765, %v773, %v885
        %v894 = vsel %vm766, %v774, %v886
        %v895 = vsel %vm767, %v775, %v887
        %v896 = vsel %vm768, %v776, %v888
        %v897 = vsel %vm769, %v777, %v889
        %v898 = vsel %vm770, %v778, %v890
        %v899 = vsel %vm771, %v779, %v891
        %v900 = vpack.c.bf16 %v893, %v892
        %v901 = vpack.c.bf16 %v895, %v894
        %v902 = vpack.c.bf16 %v897, %v896
        %v903 = vpack.c.bf16 %v899, %v898
        %v904 = vunpack.c.l.bf16 %v324
        %v905 = vperm.slane %v904, 0
        %v922 = vunpack.c.l.b16 %v308
        %v923 = vunpack.c.l.b16 %v309
        %v924 = vunpack.c.l.b16 %v310
        %v925 = vunpack.c.l.b16 %v311
        %v926 = vunpack.c.l.b16 %v312
        %v927 = vunpack.c.l.b16 %v313
        %v928 = vunpack.c.l.b16 %v314
        %v929 = vunpack.c.l.b16 %v315
        %v930 = vunpack.c.l.b16 %v316
        %v931 = vunpack.c.l.b16 %v317
        %v932 = vunpack.c.l.b16 %v318
        %v933 = vunpack.c.l.b16 %v319
        %v934 = vunpack.c.l.b16 %v320
        %v935 = vunpack.c.l.b16 %v321
        %v936 = vunpack.c.l.b16 %v322
        %v937 = vunpack.c.l.b16 %v323
        %v938 = vpack.c.b16 %v923, %v922
        %v939 = vpack.c.b16 %v925, %v924
        %v940 = vpack.c.b16 %v927, %v926
        %v941 = vpack.c.b16 %v929, %v928
        %v942 = vpack.c.b16 %v931, %v930
        %v943 = vpack.c.b16 %v933, %v932
        %v944 = vpack.c.b16 %v935, %v934
        %v945 = vpack.c.b16 %v937, %v936
        %954 = vmatpush.bf16.msra.mxu0 %v945
        %955 = vmatpush.bf16.msra.mxu0 %v944
        %956 = vmatpush.bf16.msra.mxu0 %v943
        %957 = vmatpush.bf16.msra.mxu0 %v942
        %958 = vmatpush.bf16.msra.mxu0 %v941
        %959 = vmatpush.bf16.msra.mxu0 %v940
        %960 = vmatpush.bf16.msra.mxu0 %v939
        %961 = vmatpush.bf16.msra.mxu0 %v938
        %962 = vmatmul.bf16.gmra.mxu0 %v900
        %v963 = vpop.f32.mrf.mxu0
        %v964 = vadd.f32 %v905, %v963
        %v965 = vpop.f32.mrf.mxu0
        %v966 = vadd.f32 %v905, %v965
        %967 = vmatmul.bf16.gmra.mxu0 %v901
        %v968 = vpop.f32.mrf.mxu0
        %v969 = vadd.f32 %v905, %v968
        %v970 = vpop.f32.mrf.mxu0
        %v971 = vadd.f32 %v905, %v970
        %972 = vmatmul.bf16.gmra.mxu0 %v902
        %v973 = vpop.f32.mrf.mxu0
        %v974 = vadd.f32 %v905, %v973
        %v975 = vpop.f32.mrf.mxu0
        %v976 = vadd.f32 %v905, %v975
        %977 = vmatmul.bf16.gmra.mxu0 %v903
        %v978 = vpop.f32.mrf.mxu0
        %v979 = vadd.f32 %v905, %v978
        %v980 = vpop.f32.mrf.mxu0
        %v981 = vadd.f32 %v905, %v980
        %982 = vdwg.mxu0
        %v983 = vmul.f32 %v964, 0.5
        %v984 = vmul.f32 %v966, 0.5
        %v985 = vmul.f32 %v969, 0.5
        %v986 = vmul.f32 %v971, 0.5
        %v987 = vmul.f32 %v974, 0.5
        %v988 = vmul.f32 %v976, 0.5
        %v989 = vmul.f32 %v979, 0.5
        %v990 = vmul.f32 %v981, 0.5
        %v991 = vmul.f32 %v983, 1.442695
        %v992 = vpow.pop %v991
        %v993 = vmul.f32 %v984, 1.442695
        %v994 = vpow.pop %v993
        %v995 = vmul.f32 %v985, 1.442695
        %v996 = vpow.pop %v995
        %v997 = vmul.f32 %v986, 1.442695
        %v998 = vpow.pop %v997
        %v999 = vmul.f32 %v987, 1.442695
        %v1000 = vpow.pop %v999
        %v1001 = vmul.f32 %v988, 1.442695
        %v1002 = vpow.pop %v1001
        %v1003 = vmul.f32 %v989, 1.442695
        %v1004 = vpow.pop %v1003
        %v1005 = vmul.f32 %v990, 1.442695
        %v1006 = vpow.pop %v1005
        %v1007 = vld [vmem:[%s255] sm:$0xff]
        %v1008 = vld [vmem:[%s255 + $0x8] sm:$0xff]
        %v1009 = vld [vmem:[%s255 + $0x10] sm:$0xff]
        %v1010 = vld [vmem:[%s255 + $0x18] sm:$0xff]
        %v1011 = vld [vmem:[%s255 + $0x20] sm:$0xff]
        %v1012 = vld [vmem:[%s255 + $0x28] sm:$0xff]
        %v1013 = vld [vmem:[%s255 + $0x30] sm:$0xff]
        %v1014 = vld [vmem:[%s255 + $0x38] sm:$0xff]
        %1023 = vrot.lane.b32.xlu0 %v1007, 32
        %v1024 = vpop.permute.xlu0 %1023
        %1025 = vrot.lane.b32.xlu0 %v1008, 32
        %v1026 = vpop.permute.xlu0 %1025
        %1027 = vrot.lane.b32.xlu0 %v1009, 32
        %v1028 = vpop.permute.xlu0 %1027
        %1029 = vrot.lane.b32.xlu0 %v1010, 32
        %v1030 = vpop.permute.xlu0 %1029
        %1031 = vrot.lane.b32.xlu0 %v1011, 32
        %v1032 = vpop.permute.xlu0 %1031
        %1033 = vrot.lane.b32.xlu0 %v1012, 32
        %v1034 = vpop.permute.xlu0 %1033
        %1035 = vrot.lane.b32.xlu0 %v1013, 32
        %v1036 = vpop.permute.xlu0 %1035
        %1037 = vrot.lane.b32.xlu0 %v1014, 32
        %v1038 = vpop.permute.xlu0 %1037
        %v1047 = vmul.f32 %v992, %v1024
        %v1048 = vmul.f32 %v994, %v1026
        %v1049 = vmul.f32 %v996, %v1028
        %v1050 = vmul.f32 %v998, %v1030
        %v1051 = vmul.f32 %v1000, %v1032
        %v1052 = vmul.f32 %v1002, %v1034
        %v1053 = vmul.f32 %v1004, %v1036
        %v1054 = vmul.f32 %v1006, %v1038
        %1063 = vrot.lane.b32.xlu0 %v1047, 96
        %v1064 = vpop.permute.xlu0 %1063
        %1065 = vrot.lane.b32.xlu0 %v1048, 96
        %v1066 = vpop.permute.xlu0 %1065
        %1067 = vrot.lane.b32.xlu0 %v1049, 96
        %v1068 = vpop.permute.xlu0 %1067
        %1069 = vrot.lane.b32.xlu0 %v1050, 96
        %v1070 = vpop.permute.xlu0 %1069
        %1071 = vrot.lane.b32.xlu0 %v1051, 96
        %v1072 = vpop.permute.xlu0 %1071
        %1073 = vrot.lane.b32.xlu0 %v1052, 96
        %v1074 = vpop.permute.xlu0 %1073
        %1075 = vrot.lane.b32.xlu0 %v1053, 96
        %v1076 = vpop.permute.xlu0 %1075
        %1077 = vrot.lane.b32.xlu0 %v1054, 96
        %v1078 = vpop.permute.xlu0 %1077
        %v1087 = vadd.f32 %v964, %v1064
        %v1088 = vadd.f32 %v966, %v1066
        %v1089 = vadd.f32 %v969, %v1068
        %v1090 = vadd.f32 %v971, %v1070
        %v1091 = vadd.f32 %v974, %v1072
        %v1092 = vadd.f32 %v976, %v1074
        %v1093 = vadd.f32 %v979, %v1076
        %v1094 = vadd.f32 %v981, %v1078
        %1095 = vst [vmem:[%s243] sm:$0xff] %v892
        %1096 = vst [vmem:[%s243 + $0x10] sm:$0xff] %v893
        %1097 = vst [vmem:[%s243 + $0x20] sm:$0xff] %v894
        %1098 = vst [vmem:[%s243 + $0x30] sm:$0xff] %v895
        %1099 = vst [vmem:[%s243 + $0x40] sm:$0xff] %v896
        %1100 = vst [vmem:[%s243 + $0x50] sm:$0xff] %v897
        %1101 = vst [vmem:[%s243 + $0x60] sm:$0xff] %v898
        %1102 = vst [vmem:[%s243 + $0x70] sm:$0xff] %v899
        %1103 = vst [vmem:[%s243 + $0x8] sm:$0xff] %v964
        %1104 = vst [vmem:[%s243 + $0x18] sm:$0xff] %v966
        %1105 = vst [vmem:[%s243 + $0x28] sm:$0xff] %v969
        %1106 = vst [vmem:[%s243 + $0x38] sm:$0xff] %v971
        %1107 = vst [vmem:[%s243 + $0x48] sm:$0xff] %v974
        %1108 = vst [vmem:[%s243 + $0x58] sm:$0xff] %v976
        %1109 = vst [vmem:[%s243 + $0x68] sm:$0xff] %v979
        %1110 = vst [vmem:[%s243 + $0x78] sm:$0xff] %v981
        %1119 = vrot.lane.b32.xlu0 %v1087, 64
        %v1120 = vpop.permute.xlu0 %1119
        %1121 = vrot.lane.b32.xlu0 %v1088, 64
        %v1122 = vpop.permute.xlu0 %1121
        %1123 = vrot.lane.b32.xlu0 %v1089, 64
        %v1124 = vpop.permute.xlu0 %1123
        %1125 = vrot.lane.b32.xlu0 %v1090, 64
        %v1126 = vpop.permute.xlu0 %1125
        %1127 = vrot.lane.b32.xlu0 %v1091, 64
        %v1128 = vpop.permute.xlu0 %1127
        %1129 = vrot.lane.b32.xlu0 %v1092, 64
        %v1130 = vpop.permute.xlu0 %1129
        %1131 = vrot.lane.b32.xlu0 %v1093, 64
        %v1132 = vpop.permute.xlu0 %1131
        %1133 = vrot.lane.b32.xlu0 %v1094, 64
        %v1134 = vpop.permute.xlu0 %1133
        %vm1143 = vcmask 785920
        %1144 = vst.msk [vmem:[%s243 + $0x8] sm:$0xff] %vm1143, %v1120
        %1145 = vst.msk [vmem:[%s243 + $0x18] sm:$0xff] %vm1143, %v1122
        %1146 = vst.msk [vmem:[%s243 + $0x28] sm:$0xff] %vm1143, %v1124
        %1147 = vst.msk [vmem:[%s243 + $0x38] sm:$0xff] %vm1143, %v1126
        %1148 = vst.msk [vmem:[%s243 + $0x48] sm:$0xff] %vm1143, %v1128
        %1149 = vst.msk [vmem:[%s243 + $0x58] sm:$0xff] %vm1143, %v1130
        %1150 = vst.msk [vmem:[%s243 + $0x68] sm:$0xff] %vm1143, %v1132
        %1151 = vst.msk [vmem:[%s243 + $0x78] sm:$0xff] %vm1143, %v1134
        %s1152 = sand.u32 %s122, 1
        %s1153 = scalar_lea.sflag [#allocation4], %s1152
        %s1154 = sand.u32 %s122, 1
        %s1155 = smul.addr %s1154, 128
        %s1156 = scalar_lea.vmem [#allocation7], %s1155
        // Predicated region
        $region45: #{tpu_custom_call.1} parent=35 // pred_check
          %p1157 = pneg %p132
        $region46: #{tpu_custom_call.1} parent=35 // pred_check_branch
          %1159 = sbr.rel (%p1157) target = $region48
        $region47: #{tpu_custom_call.1} parent=35 // pred_region
          %s1160 = smul.u32 8, %s20
          %1162 = vsyncadd %s1153, 0
          %s1163 = smul.addr %s1160, 2
          %s1164 = smul.addr %s1163, 8
          %s1165 = scalar_lea.hbm %s4, %s1164
          %s1166 = sshll.u32 %s1156, 4
          %s1167 = int_to_ptr.vmem [resolvable:$true] %s1166
          %s1168 = sshll.u32 %s1165, 4
          %s1169 = int_to_ptr.hbm [resolvable:$true] %s1168
          %1174 = dma.vmem_to_hbm [thread:$0]  %s1167, 2048, %s1169, %s1153, 256, 256, 16
        $region48: #{tpu_custom_call.1} parent=35 // pred_fallthru
          _
      $region36: #{tpu_custom_call.1} parent=5 // pred_fallthru
        _
      %p1175 = scmp.le.s32.totalorder 2, %s15
      // Predicated region
      $region49: #{tpu_custom_call.1} parent=5 // pred_check
        %p1176 = pneg %p1175
      $region50: #{tpu_custom_call.1} parent=5 // pred_check_branch
        %1178 = sbr.rel (%p1176) target = $region52
      $region51: #{tpu_custom_call.1} parent=5 // pred_region
        %s1179 = ssub.s32 %s15, 2
        // Predicated region
        $region53: #{tpu_custom_call.1} parent=51 // pred_check
          %p1180 = pneg %p138
        $region54: #{tpu_custom_call.1} parent=51 // pred_check_branch
          %1182 = sbr.rel (%p1180) target = $region56
        $region55: #{tpu_custom_call.1} parent=51 // pred_region
          %s1183 = sand.u32 %s123, 1
          %s1184 = scalar_lea.sflag [#allocation4], %s1183
          %s1185 = sand.u32 %s123, 1
          %s1186 = smul.addr %s1185, 128
          %s1187 = scalar_lea.vmem [#allocation7], %s1186
          %1189 = dma.done %s1184, 2048
        $region56: #{tpu_custom_call.1} parent=51 // pred_fallthru
          _
      $region52: #{tpu_custom_call.1} parent=5 // pred_fallthru
        _
    $region6: #{tpu_custom_call.1} parent=1 // loop_footer
      %s19 = sadd.s32 1, %s15
    $region7: #{tpu_custom_call.1} parent=1 // loop_footer_branch
      %14 = sbr.rel target = $region3
    $region8: #{tpu_custom_call.1} parent=1 // loop_exit
      _
    %1190 = vsyncpa [#allocation3], 1
    %s1191 = scalar_lea.sflag [#allocation3], 1
    %1192 = vsyncpa %s1191, 1
    %1193 = vsyncpa [#allocation6], 1
    %1194 = vsyncpa [#allocation4], 1
    %s1195 = scalar_lea.sflag [#allocation4], 1
    %1196 = vsyncpa %s1195, 1

</llo_original>
